<compile_context>
chip_gen: v5e
topology: v5e:2x2
jax: 0.10.0
libtpu: 0.0.40
codegen_flags: <defaults>
</compile_context>

<pallas_src>
import jax
import jax.numpy as jnp
from jax import lax
from jax.experimental import pallas as pl
from jax.experimental.pallas import tpu as pltpu

_LANE = 128          # lane width: large-batch path pads the action dim to this
_SUBLANE = 8         # sublane width: batch / small action padding granularity
_SMALL_BATCH_MAX = 32  # b <= this -> weight-DMA-bound regime -> narrow-weight path


def _round_up(x, m):
    return ((x + m - 1) // m) * m


# --------------------------------------------------------------------------- #
# Kernel
# --------------------------------------------------------------------------- #
def _make_linear_kernel(rhs_contract_dim):
    """Kernel: o = cast(x) @ W (+ bias), f32 accumulation on the MXU.

    rhs_contract_dim = 0 -> W is (D, NA)  : canonical (M,K)x(K,N)   (large batch)
    rhs_contract_dim = 1 -> W is (NA, D)  : x @ W^T on a tiny weight (small batch)
    """
    def kernel(x_ref, w_ref, b_ref, o_ref):
        x = x_ref[...].astype(jnp.bfloat16)          # cast in-kernel (VPU), keep HBM f32
        acc = lax.dot_general(
            x, w_ref[...],
            dimension_numbers=(((1,), (rhs_contract_dim,)), ((), ())),
            preferred_element_type=jnp.float32,
        )
        o_ref[...] = (acc + b_ref[...]).astype(o_ref.dtype)
    return kernel


# --------------------------------------------------------------------------- #
# Parameter preparation (one-time, not per forward call)
# --------------------------------------------------------------------------- #
def prepare_qnet_params(weight, bias, *, compute_dtype=jnp.bfloat16):
    """weight: (na, D) nn.Linear weight; bias: (na,).

    Returns both layouts the kernel may use:
      w_rows: (na8, D)    native row layout, lane-dense in D   -> small-batch path
      w_cols: (D, na128)  pre-transposed (K, N), lane-dense N  -> large-batch path
    Weights stored in bf16 (MXU-native); bias kept f32 and padded to match.
    """
    na, D = weight.shape
    na8 = _round_up(na, _SUBLANE)
    na128 = _round_up(na, _LANE)
    w = weight.astype(compute_dtype)
    b = bias.astype(jnp.float32)
    w_rows = jnp.zeros((na8, D), compute_dtype).at[:na, :].set(w)
    b_rows = jnp.zeros((1, na8), jnp.float32).at[0, :na].set(b)
    w_cols = jnp.zeros((D, na128), compute_dtype).at[:, :na].set(w.T)
    b_cols = jnp.zeros((1, na128), jnp.float32).at[0, :na].set(b)
    return {
        "w_rows": w_rows, "b_rows": b_rows,
        "w_cols": w_cols, "b_cols": b_cols,
        "num_actions": na,
    }


# --------------------------------------------------------------------------- #
# Tile sizing from the chip's real VMEM
# --------------------------------------------------------------------------- #
def _vmem_budgets():
    """Returns (tile-sizing budget, vmem_limit_bytes) from the chip's VMEM size."""
    try:
        cap = int(pltpu.get_tpu_info().vmem_capacity_bytes)
    except Exception:
        cap = 64 * 1024 * 1024  # conservative (v7x-sized) fallback
    budget = max(min(int(cap * 0.40), 48 * 1024 * 1024), 8 * 1024 * 1024)
    vmem_limit = max(min(int(cap * 0.60), 64 * 1024 * 1024), budget + (4 << 20))
    return budget, vmem_limit


def _choose_tm(b_pad, D, na_out, x_itemsize, w_bytes, budget):
    """Largest batch tile (multiple of 256 when big, else 8) fitting the budget."""
    def footprint(tm):
        return (2 * tm * D * x_itemsize        # double-buffered activation tiles
                + w_bytes                       # resident (single-buffered) weight
                + 2 * tm * na_out * 4           # double-buffered f32 output tiles
                + tm * D * 2                    # in-kernel bf16 copy of x
                + tm * na_out * 4               # f32 accumulator
                + 2 * na_out * 4)               # bias
    cap = min(b_pad, 4096)
    align = 256 if cap >= 256 else _SUBLANE
    tm = (cap // align) * align
    while tm > align and footprint(tm) > budget:
        tm -= align
    tm = max(tm, align)
    # v7x megacore: give the "parallel" batch axis >= 2 grid steps for big batches.
    if b_pad > 256:
        tm = min(tm, _round_up((b_pad + 1) // 2, align))
    return max(tm, _SUBLANE)


# --------------------------------------------------------------------------- #
# pallas_call wrapper
# --------------------------------------------------------------------------- #
def _run_linear(x, w, bias2d, *, tm, grid_n, rhs_contract_dim, na_out,
                vmem_limit, flops, bytes_accessed, single_buffer_params):
    b_pad, D = x.shape
    param_kwargs = {"pipeline_mode": pl.Buffered(1)} if single_buffer_params else {}
    return pl.pallas_call(
        _make_linear_kernel(rhs_contract_dim),
        out_shape=jax.ShapeDtypeStruct((b_pad, na_out), jnp.float32),
        grid_spec=pltpu.PrefetchScalarGridSpec(
            num_scalar_prefetch=0,
            grid=(grid_n,),
            in_specs=[
                # activations: tiled / double-buffered over the batch
                pl.BlockSpec((tm, D), lambda i: (i, 0)),
                # weight & bias: resident across the whole grid -> single-buffered
                pl.BlockSpec(tuple(w.shape), lambda i: (0, 0), **param_kwargs),
                pl.BlockSpec(tuple(bias2d.shape), lambda i: (0, 0), **param_kwargs),
            ],
            out_specs=pl.BlockSpec((tm, na_out), lambda i: (i, 0)),
        ),
        compiler_params=pltpu.CompilerParams(
            dimension_semantics=("parallel",),     # batch tiles are independent
            vmem_limit_bytes=int(vmem_limit),
        ),
        cost_estimate=pl.CostEstimate(
            flops=int(flops), transcendentals=0, bytes_accessed=int(bytes_accessed)),
    )(x, w, bias2d)


def linear_qnet_forward(state, params, num_actions):
    """Q-values for all actions.

    state:  (b, H, W, C*state_history) float32
    params: dict from prepare_qnet_params
    returns (b, num_actions) float32
    """
    b = int(state.shape[0])
    D = 1
    for s in state.shape[1:]:
        D *= int(s)
    x = state.reshape(b, D).astype(jnp.float32)   # glue reshape (no data movement)

    small = b <= _SMALL_BATCH_MAX
    if small:
        w, bias2d = params["w_rows"], params["b_rows"]
        na_out, rhs_dim = int(w.shape[0]), 1      # x @ W^T on the tiny (8, D) weight
        assert int(w.shape[1]) == D, "state size does not match prepared params"
    else:
        w, bias2d = params["w_cols"], params["b_cols"]
        na_out, rhs_dim = int(w.shape[1]), 0      # canonical (M,K)x(K,N)
        assert int(w.shape[0]) == D, "state size does not match prepared params"

    budget, vmem_limit = _vmem_budgets()
    w_bytes = w.size * w.dtype.itemsize

    b_pad = _round_up(max(b, _SUBLANE), _SUBLANE)
    if small:
        tm = b_pad                                # single tile, grid=(1,)
    else:
        tm = _choose_tm(b_pad, D, na_out, 4, w_bytes, budget)
        b_pad = _round_up(b_pad, tm)
    if b_pad != b:
        x = jnp.pad(x, ((0, b_pad - b), (0, 0)))  # padded rows evaluate to bias; sliced off
    grid_n = b_pad // tm

    flops = 2 * b_pad * D * na_out
    bytes_accessed = b_pad * D * 4 + w_bytes + bias2d.size * 4 + b_pad * na_out * 4

    kwargs = dict(tm=tm, grid_n=grid_n, rhs_contract_dim=rhs_dim, na_out=na_out,
                  vmem_limit=vmem_limit, flops=flops, bytes_accessed=bytes_accessed)
    try:
        out = _run_linear(x, w, bias2d, single_buffer_params=True, **kwargs)
    except Exception:
        # pl.Buffered(1) on the resident weight/bias is an optimization only;
        # fall back to default double-buffering if this build rejects it.
        out = _run_linear(x, w, bias2d, single_buffer_params=False, **kwargs)

    return out[:b, :num_actions]


# --------------------------------------------------------------------------- #
# Self-test
# --------------------------------------------------------------------------- #
if __name__ == "__main__":
    # Module-consistent small shapes:
    #   observation_space.shape = (H, W, C) = (16, 16, 1), state_history = 4
    #   -> forward input (batch, H, W, C*state_history) = (2, 16, 16, 4)
    #   action_space.n = 6
    batch, H, W, C, csh, na = 2, 16, 16, 1, 4, 6
    D = H * W * C * csh

    key = jax.random.PRNGKey(0)
    k_state, k_w, k_b, k_state2 = jax.random.split(key, 4)

    state = jax.random.normal(k_state, (batch, H, W, C * csh), dtype=jnp.float32)

    # nn.Linear-style init: U(-1/sqrt(D), 1/sqrt(D))
    bound = 1.0 / (D ** 0.5)
    weight = jax.random.uniform(k_w, (na, D), jnp.float32, -bound, bound)
    bias = jax.random.uniform(k_b, (na,), jnp.float32, -bound, bound)

    params = prepare_qnet_params(weight, bias)

    # --- small-batch (inference) path -------------------------------------
    q_values = jax.block_until_ready(linear_qnet_forward(state, params, na))
    ref = state.reshape(batch, D) @ weight.T + bias
    assert q_values.shape == (batch, na)
    # bf16 operands with f32 accumulation -> loosened tolerance vs pure-f32 ref.
    assert jnp.allclose(q_values, ref, atol=2e-2, rtol=2e-2)

    # --- large-batch (training) path: 128-padded output, batch tiling ------
    big_batch = 384
    state_big = jax.random.normal(k_state2, (big_batch, H, W, C * csh), jnp.float32)
    q_big = jax.block_until_ready(linear_qnet_forward(state_big, params, na))
    ref_big = state_big.reshape(big_batch, D) @ weight.T + bias
    assert q_big.shape == (big_batch, na)
    assert jnp.allclose(q_big, ref_big, atol=2e-2, rtol=2e-2)

    print("KERNEL_OK")
</pallas_src>

<mosaic_0001>
module attributes {stable_mosaic.version = 11 : i64} {
  func.func @kernel(%arg0: i32, %arg1: memref<8x1024xf32, #tpu.memory_space<vmem>>, %arg2: memref<8x1024xbf16, #tpu.memory_space<vmem>>, %arg3: memref<1x8xf32, #tpu.memory_space<vmem>>, %arg4: memref<8x8xf32, #tpu.memory_space<vmem>>) attributes {dimension_semantics = [#tpu.dimension_semantics<parallel>], iteration_bounds = array<i64: 1>, scalar_prefetch = 0 : i64, scratch_operands = 0 : i64, tpu.core_type = #tpu.core_type<tc>, window_params = [{transform_indices = @transform_0, window_bounds = array<i64: 8, 1024>}, {pipeline_mode = #tpu.pipeline_mode<synchronous>, transform_indices = @transform_1, window_bounds = array<i64: 8, 1024>}, {pipeline_mode = #tpu.pipeline_mode<synchronous>, transform_indices = @transform_2, window_bounds = array<i64: 1, 8>}, {transform_indices = @transform_3, window_bounds = array<i64: 8, 8>}]} {
    %c0 = arith.constant 0 : index
    %c0_0 = arith.constant 0 : index
    %0 = vector.load %arg1[%c0, %c0_0] : memref<8x1024xf32, #tpu.memory_space<vmem>>, vector<8x1024xf32>
    %1 = arith.truncf %0 : vector<8x1024xf32> to vector<8x1024xbf16>
    %c0_1 = arith.constant 0 : index
    %c0_2 = arith.constant 0 : index
    %2 = vector.load %arg2[%c0_1, %c0_2] : memref<8x1024xbf16, #tpu.memory_space<vmem>>, vector<8x1024xbf16>
    %cst = arith.constant dense<0.000000e+00> : vector<8x8xf32>
    %3 = tpu.matmul %1, %2, %cst {dimension_numbers = #tpu.dot_dimension_numbers<[1], [1], [0], [0], [0, 0, 1, 0], [], []>} : vector<8x1024xbf16>, vector<8x1024xbf16>, vector<8x8xf32> -> vector<8x8xf32>
    %c0_3 = arith.constant 0 : index
    %c0_4 = arith.constant 0 : index
    %4 = vector.load %arg3[%c0_3, %c0_4] : memref<1x8xf32, #tpu.memory_space<vmem>>, vector<1x8xf32>
    %5 = vector.broadcast %4 : vector<1x8xf32> to vector<8x8xf32>
    %6 = arith.addf %3, %5 : vector<8x8xf32>
    %c0_5 = arith.constant 0 : index
    %c0_6 = arith.constant 0 : index
    %7 = vector.load %arg4[%c0_5, %c0_6] : memref<8x8xf32, #tpu.memory_space<vmem>>, vector<8x8xf32>
    tpu.vector_store %arg4[%c0_5, %c0_6], %6 {strides = array<i32>} : memref<8x8xf32, #tpu.memory_space<vmem>>, vector<8x8xf32>,
    return
  }
  func.func @transform_0(%arg0: i32) -> (i32, i32) {
    %c0_i32 = arith.constant 0 : i32
    %c0_i32_0 = arith.constant 0 : i32
    return %arg0, %c0_i32 : i32, i32
  }
  func.func @transform_1(%arg0: i32) -> (i32, i32) {
    %c0_i32 = arith.constant 0 : i32
    %c0_i32_0 = arith.constant 0 : i32
    %c0_i32_1 = arith.constant 0 : i32
    return %c0_i32, %c0_i32_0 : i32, i32
  }
  func.func @transform_2(%arg0: i32) -> (i32, i32) {
    %c0_i32 = arith.constant 0 : i32
    %c0_i32_0 = arith.constant 0 : i32
    %c0_i32_1 = arith.constant 0 : i32
    return %c0_i32, %c0_i32_0 : i32, i32
  }
  func.func @transform_3(%arg0: i32) -> (i32, i32) {
    %c0_i32 = arith.constant 0 : i32
    %c0_i32_0 = arith.constant 0 : i32
    return %arg0, %c0_i32 : i32, i32
  }
}

module attributes {stable_mosaic.version = 11 : i64} {
  func.func @kernel(%arg0: i32, %arg1: memref<8x1024xf32, #tpu.memory_space<vmem>>, %arg2: memref<8x1024xbf16, #tpu.memory_space<vmem>>, %arg3: memref<1x8xf32, #tpu.memory_space<vmem>>, %arg4: memref<8x8xf32, #tpu.memory_space<vmem>>) attributes {dimension_semantics = [#tpu.dimension_semantics<parallel>], iteration_bounds = array<i64: 1>, scalar_prefetch = 0 : i64, scratch_operands = 0 : i64, tpu.core_type = #tpu.core_type<tc>, window_params = [{transform_indices = @transform_0, window_bounds = array<i64: 8, 1024>}, {pipeline_mode = #tpu.pipeline_mode<synchronous>, transform_indices = @transform_1, window_bounds = array<i64: 8, 1024>}, {pipeline_mode = #tpu.pipeline_mode<synchronous>, transform_indices = @transform_2, window_bounds = array<i64: 1, 8>}, {transform_indices = @transform_3, window_bounds = array<i64: 8, 8>}]} {
    %c0 = arith.constant 0 : index
    %c0_0 = arith.constant 0 : index
    %0 = vector.load %arg1[%c0, %c0_0] : memref<8x1024xf32, #tpu.memory_space<vmem>>, vector<8x1024xf32>
    %1 = arith.truncf %0 : vector<8x1024xf32> to vector<8x1024xbf16>
    %c0_1 = arith.constant 0 : index
    %c0_2 = arith.constant 0 : index
    %2 = vector.load %arg2[%c0_1, %c0_2] : memref<8x1024xbf16, #tpu.memory_space<vmem>>, vector<8x1024xbf16>
    %cst = arith.constant dense<0.000000e+00> : vector<8x8xf32>
    %3 = tpu.matmul %1, %2, %cst {dimension_numbers = #tpu.dot_dimension_numbers<[1], [1], [0], [0], [0, 0, 1, 0], [], []>} : vector<8x1024xbf16>, vector<8x1024xbf16>, vector<8x8xf32> -> vector<8x8xf32>
    %c0_3 = arith.constant 0 : index
    %c0_4 = arith.constant 0 : index
    %4 = vector.load %arg3[%c0_3, %c0_4] : memref<1x8xf32, #tpu.memory_space<vmem>>, vector<1x8xf32>
    %5 = vector.broadcast %4 : vector<1x8xf32> to vector<8x8xf32>
    %6 = arith.addf %3, %5 : vector<8x8xf32>
    %c0_5 = arith.constant 0 : index
    %c0_6 = arith.constant 0 : index
    %7 = vector.load %arg4[%c0_5, %c0_6] : memref<8x8xf32, #tpu.memory_space<vmem>>, vector<8x8xf32>
    tpu.vector_store %arg4[%c0_5, %c0_6], %6 {strides = array<i32>} : memref<8x8xf32, #tpu.memory_space<vmem>>, vector<8x8xf32>,
    return
  }
  func.func @transform_0(%arg0: i32) -> (i32, i32) {
    %c0_i32 = arith.constant 0 : i32
    %c0_i32_0 = arith.constant 0 : i32
    return %arg0, %c0_i32 : i32, i32
  }
  func.func @transform_1(%arg0: i32) -> (i32, i32) {
    %c0_i32 = arith.constant 0 : i32
    %c0_i32_0 = arith.constant 0 : i32
    %c0_i32_1 = arith.constant 0 : i32
    return %c0_i32, %c0_i32_0 : i32, i32
  }
  func.func @transform_2(%arg0: i32) -> (i32, i32) {
    %c0_i32 = arith.constant 0 : i32
    %c0_i32_0 = arith.constant 0 : i32
    %c0_i32_1 = arith.constant 0 : i32
    return %c0_i32, %c0_i32_0 : i32, i32
  }
  func.func @transform_3(%arg0: i32) -> (i32, i32) {
    %c0_i32 = arith.constant 0 : i32
    %c0_i32_0 = arith.constant 0 : i32
    return %arg0, %c0_i32 : i32, i32
  }
}

</mosaic_0001>

<llo_original>
// kernel: tpu_custom_call.1
$region0: #{tpu_custom_call.1}
  #allocation0 [shape = 'u32[]', space=smem, size = 0x4, offset = 0x4, fixed_abs, tag = 'smem constant byte address 0x4 - core index']
  #allocation1 [shape = 'u32[72,128]{1,0:T(1,128)}', space=vmem, size = 0x9000, scoped, tag = 'internal scratch']
  %s0 = inlined_call_operand.hbm [shape: f32[8,1024], index: 0, kind: input, shape index: {}]
  %s1 = inlined_call_operand.hbm [shape: bf16[8,1024], index: 1, kind: input, shape index: {}]
  %s2 = inlined_call_operand.vmem [shape: f32[1,8], index: 2, kind: input, shape index: {}]
  %s3 = inlined_call_operand.hbm [shape: f32[8,8], index: 3, kind: output, shape index: {}]
  %s4 = sld [smem:[#allocation0]]
  $region30: #{tpu_custom_call.1} parent=0
    _
  %s6 = ssub.s32 1, %s4
  %s7 = scalar_select 0, %s6, %s4
  $region1: #{tpu_custom_call.1} parent=0
    #allocation2 [shape = 'u8[32768]{0}', space=vmem, size = 0x8000, scoped, tag = 'input window, operand 0, single buffered']
    #allocation3 [shape = 's32[1]{0}', space=sflag, size = 0x4, scoped, tag = 'scoped memory for tpu_custom_call.1']
    #allocation4 [shape = 's32[1]{0}', space=sflag, size = 0x4, scoped, tag = 'scoped memory for tpu_custom_call.1']
    #allocation5 [shape = 'u8[16384]{0}', space=vmem, size = 0x4000, scoped, tag = 'input window, operand 1, single buffered']
    #allocation6 [shape = 's32[1]{0}', space=sflag, size = 0x4, scoped, tag = 'scoped memory for tpu_custom_call.1']
    #allocation7 [shape = 'u8[4096]{0}', space=vmem, size = 0x1000, scoped, tag = 'output window, operand 0, single buffered']
    %8 = vsyncpa [#allocation3], 0
    %9 = vsyncpa [#allocation6], 0
    %10 = vsyncpa [#allocation4], 0
    // Predicated region
    $region2: #{tpu_custom_call.1} parent=1 // pred_check
      _
    $region3: #{tpu_custom_call.1} parent=1 // pred_check_branch
      %12 = sbr.rel (0) target = $region5
    $region4: #{tpu_custom_call.1} parent=1 // pred_region
      %14 = vsyncadd [#allocation3], 0
      %s16 = sshll.u32 %s0, 4
      %s17 = int_to_ptr.hbm [resolvable:$true] %s16
      %s18 = sshll.u32 [#allocation2], 4
      %s19 = int_to_ptr.vmem [resolvable:$true] %s18
      %21 = dma.hbm_to_vmem [thread:$0]  %s17, 1024, %s19, [#allocation3]
    $region5: #{tpu_custom_call.1} parent=1 // pred_fallthru
      _
    // Predicated region
    $region6: #{tpu_custom_call.1} parent=1 // pred_check
      _
    $region7: #{tpu_custom_call.1} parent=1 // pred_check_branch
      %23 = sbr.rel (0) target = $region9
    $region8: #{tpu_custom_call.1} parent=1 // pred_region
      %25 = vsyncadd [#allocation6], 0
      %s27 = sshll.u32 %s1, 4
      %s28 = int_to_ptr.hbm [resolvable:$true] %s27
      %s29 = sshll.u32 [#allocation5], 4
      %s30 = int_to_ptr.vmem [resolvable:$true] %s29
      %32 = dma.hbm_to_vmem [thread:$0]  %s28, 512, %s30, [#allocation6]
    $region9: #{tpu_custom_call.1} parent=1 // pred_fallthru
      _
    // Predicated region
    $region10: #{tpu_custom_call.1} parent=1 // pred_check
      _
    $region11: #{tpu_custom_call.1} parent=1 // pred_check_branch
      %34 = sbr.rel (0) target = $region13
    $region12: #{tpu_custom_call.1} parent=1 // pred_region
      _
    $region13: #{tpu_custom_call.1} parent=1 // pred_fallthru
      _
    // Predicated region
    $region14: #{tpu_custom_call.1} parent=1 // pred_check
      _
    $region15: #{tpu_custom_call.1} parent=1 // pred_check_branch
      %36 = sbr.rel (0) target = $region17
    $region16: #{tpu_custom_call.1} parent=1 // pred_region
      %38 = dma.done [#allocation3], 1024
    $region17: #{tpu_custom_call.1} parent=1 // pred_fallthru
      _
    // Predicated region
    $region18: #{tpu_custom_call.1} parent=1 // pred_check
      _
    $region19: #{tpu_custom_call.1} parent=1 // pred_check_branch
      %40 = sbr.rel (0) target = $region21
    $region20: #{tpu_custom_call.1} parent=1 // pred_region
      %42 = dma.done [#allocation6], 512
    $region21: #{tpu_custom_call.1} parent=1 // pred_fallthru
      _
    %v44 = vld [vmem:[#allocation2] sm:$0xff]
    %v45 = vld [vmem:[#allocation2 + $0x8] sm:$0xff]
    %v46 = vld [vmem:[#allocation2 + $0x10] sm:$0xff]
    %v47 = vld [vmem:[#allocation2 + $0x18] sm:$0xff]
    %v48 = vld [vmem:[#allocation2 + $0x20] sm:$0xff]
    %v49 = vld [vmem:[#allocation2 + $0x28] sm:$0xff]
    %v50 = vld [vmem:[#allocation2 + $0x30] sm:$0xff]
    %v51 = vld [vmem:[#allocation2 + $0x38] sm:$0xff]
    %v52 = vpack.c.bf16 %v44, %v44
    %v53 = vpack.c.bf16 %v45, %v45
    %v54 = vpack.c.bf16 %v46, %v46
    %v55 = vpack.c.bf16 %v47, %v47
    %v56 = vpack.c.bf16 %v48, %v48
    %v57 = vpack.c.bf16 %v49, %v49
    %v58 = vpack.c.bf16 %v50, %v50
    %v59 = vpack.c.bf16 %v51, %v51
    %v60 = vld [vmem:[#allocation5] sm:$0xff]
    %v61 = vld [vmem:[#allocation5 + $0x8] sm:$0xff]
    %v62 = vld [vmem:[#allocation5 + $0x10] sm:$0xff]
    %v63 = vld [vmem:[#allocation5 + $0x18] sm:$0xff]
    %v64 = vld [vmem:[%s2] sm:$0x1]
    %v66 = vperm.slane %v64, 0
    %v72 = vunpack.c.l.b16 %v60
    %v73 = vunpack.c.h.b16 %v60
    %v74 = vunpack.c.l.b16 %v61
    %v75 = vunpack.c.h.b16 %v61
    %v76 = vunpack.c.l.b16 %v62
    %v77 = vunpack.c.h.b16 %v62
    %v78 = vunpack.c.l.b16 %v63
    %v79 = vunpack.c.h.b16 %v63
    %v80 = vpack.c.b16 %v72, %v72
    %v81 = vpack.c.b16 %v73, %v73
    %v82 = vpack.c.b16 %v74, %v74
    %v83 = vpack.c.b16 %v75, %v75
    %v84 = vpack.c.b16 %v76, %v76
    %v85 = vpack.c.b16 %v77, %v77
    %v86 = vpack.c.b16 %v78, %v78
    %v87 = vpack.c.b16 %v79, %v79
    %96 = vmatpush.bf16.xpose.msra.mxu0 0
    %97 = vmatpush.bf16.xpose.msra.mxu0 0
    %98 = vmatpush.bf16.xpose.msra.mxu0 0
    %99 = vmatpush.bf16.xpose.msra.mxu0 0
    %100 = vmatpush.bf16.xpose.msra.mxu0 0
    %101 = vmatpush.bf16.xpose.msra.mxu0 0
    %102 = vmatpush.bf16.xpose.msra.mxu0 0
    %103 = vmatpush.bf16.xpose.msra.mxu0 %v80
    %104 = vmatmul.bf16.gmra.mxu0 %v52
    %v105 = vpop.f32.mrf.mxu0
    %v106 = vadd.f32 %v66, %v105
    %v107 = vpop.f32.mrf.mxu0
    %108 = vdwg.mxu0
    %109 = vmatpush.bf16.xpose.msra.mxu0 0
    %110 = vmatpush.bf16.xpose.msra.mxu0 0
    %111 = vmatpush.bf16.xpose.msra.mxu0 0
    %112 = vmatpush.bf16.xpose.msra.mxu0 0
    %113 = vmatpush.bf16.xpose.msra.mxu0 0
    %114 = vmatpush.bf16.xpose.msra.mxu0 0
    %115 = vmatpush.bf16.xpose.msra.mxu0 0
    %116 = vmatpush.bf16.xpose.msra.mxu0 %v81
    %117 = vmatmul.bf16.gmra.mxu0 %v53
    %v118 = vpop.f32.mrf.mxu0
    %v119 = vadd.f32 %v106, %v118
    %v120 = vpop.f32.mrf.mxu0
    %121 = vdwg.mxu0
    %122 = vmatpush.bf16.xpose.msra.mxu0 0
    %123 = vmatpush.bf16.xpose.msra.mxu0 0
    %124 = vmatpush.bf16.xpose.msra.mxu0 0
    %125 = vmatpush.bf16.xpose.msra.mxu0 0
    %126 = vmatpush.bf16.xpose.msra.mxu0 0
    %127 = vmatpush.bf16.xpose.msra.mxu0 0
    %128 = vmatpush.bf16.xpose.msra.mxu0 0
    %129 = vmatpush.bf16.xpose.msra.mxu0 %v82
    %130 = vmatmul.bf16.gmra.mxu0 %v54
    %v131 = vpop.f32.mrf.mxu0
    %v132 = vadd.f32 %v119, %v131
    %v133 = vpop.f32.mrf.mxu0
    %134 = vdwg.mxu0
    %135 = vmatpush.bf16.xpose.msra.mxu0 0
    %136 = vmatpush.bf16.xpose.msra.mxu0 0
    %137 = vmatpush.bf16.xpose.msra.mxu0 0
    %138 = vmatpush.bf16.xpose.msra.mxu0 0
    %139 = vmatpush.bf16.xpose.msra.mxu0 0
    %140 = vmatpush.bf16.xpose.msra.mxu0 0
    %141 = vmatpush.bf16.xpose.msra.mxu0 0
    %142 = vmatpush.bf16.xpose.msra.mxu0 %v83
    %143 = vmatmul.bf16.gmra.mxu0 %v55
    %v144 = vpop.f32.mrf.mxu0
    %v145 = vadd.f32 %v132, %v144
    %v146 = vpop.f32.mrf.mxu0
    %147 = vdwg.mxu0
    %148 = vmatpush.bf16.xpose.msra.mxu0 0
    %149 = vmatpush.bf16.xpose.msra.mxu0 0
    %150 = vmatpush.bf16.xpose.msra.mxu0 0
    %151 = vmatpush.bf16.xpose.msra.mxu0 0
    %152 = vmatpush.bf16.xpose.msra.mxu0 0
    %153 = vmatpush.bf16.xpose.msra.mxu0 0
    %154 = vmatpush.bf16.xpose.msra.mxu0 0
    %155 = vmatpush.bf16.xpose.msra.mxu0 %v84
    %156 = vmatmul.bf16.gmra.mxu0 %v56
    %v157 = vpop.f32.mrf.mxu0
    %v158 = vadd.f32 %v145, %v157
    %v159 = vpop.f32.mrf.mxu0
    %160 = vdwg.mxu0
    %161 = vmatpush.bf16.xpose.msra.mxu0 0
    %162 = vmatpush.bf16.xpose.msra.mxu0 0
    %163 = vmatpush.bf16.xpose.msra.mxu0 0
    %164 = vmatpush.bf16.xpose.msra.mxu0 0
    %165 = vmatpush.bf16.xpose.msra.mxu0 0
    %166 = vmatpush.bf16.xpose.msra.mxu0 0
    %167 = vmatpush.bf16.xpose.msra.mxu0 0
    %168 = vmatpush.bf16.xpose.msra.mxu0 %v85
    %169 = vmatmul.bf16.gmra.mxu0 %v57
    %v170 = vpop.f32.mrf.mxu0
    %v171 = vadd.f32 %v158, %v170
    %v172 = vpop.f32.mrf.mxu0
    %173 = vdwg.mxu0
    %174 = vmatpush.bf16.xpose.msra.mxu0 0
    %175 = vmatpush.bf16.xpose.msra.mxu0 0
    %176 = vmatpush.bf16.xpose.msra.mxu0 0
    %177 = vmatpush.bf16.xpose.msra.mxu0 0
    %178 = vmatpush.bf16.xpose.msra.mxu0 0
    %179 = vmatpush.bf16.xpose.msra.mxu0 0
    %180 = vmatpush.bf16.xpose.msra.mxu0 0
    %181 = vmatpush.bf16.xpose.msra.mxu0 %v86
    %182 = vmatmul.bf16.gmra.mxu0 %v58
    %v183 = vpop.f32.mrf.mxu0
    %v184 = vadd.f32 %v171, %v183
    %v185 = vpop.f32.mrf.mxu0
    %186 = vdwg.mxu0
    %187 = vmatpush.bf16.xpose.msra.mxu0 0
    %188 = vmatpush.bf16.xpose.msra.mxu0 0
    %189 = vmatpush.bf16.xpose.msra.mxu0 0
    %190 = vmatpush.bf16.xpose.msra.mxu0 0
    %191 = vmatpush.bf16.xpose.msra.mxu0 0
    %192 = vmatpush.bf16.xpose.msra.mxu0 0
    %193 = vmatpush.bf16.xpose.msra.mxu0 0
    %194 = vmatpush.bf16.xpose.msra.mxu0 %v87
    %195 = vmatmul.bf16.gmra.mxu0 %v59
    %v196 = vpop.f32.mrf.mxu0
    %v197 = vadd.f32 %v184, %v196
    %v198 = vpop.f32.mrf.mxu0
    %199 = vdwg.mxu0
    %vm200 = vcmask 64512
    %201 = vst.msk [vmem:[#allocation7] sm:$0xff] %vm200, %v197
    // Predicated region
    $region22: #{tpu_custom_call.1} parent=1 // pred_check
      _
    $region23: #{tpu_custom_call.1} parent=1 // pred_check_branch
      %203 = sbr.rel (0) target = $region25
    $region24: #{tpu_custom_call.1} parent=1 // pred_region
      %205 = vsyncadd [#allocation4], 0
      %s207 = sshll.u32 [#allocation7], 4
      %s208 = int_to_ptr.vmem [resolvable:$true] %s207
      %s209 = sshll.u32 %s3, 4
      %s210 = int_to_ptr.hbm [resolvable:$true] %s209
      %212 = dma.vmem_to_hbm [thread:$0]  %s208, 128, %s210, [#allocation4]
    $region25: #{tpu_custom_call.1} parent=1 // pred_fallthru
      _
    // Predicated region
    $region26: #{tpu_custom_call.1} parent=1 // pred_check
      _
    $region27: #{tpu_custom_call.1} parent=1 // pred_check_branch
      %214 = sbr.rel (0) target = $region29
    $region28: #{tpu_custom_call.1} parent=1 // pred_region
      %216 = dma.done [#allocation4], 128
    $region29: #{tpu_custom_call.1} parent=1 // pred_fallthru
      _
    %217 = vsyncpa [#allocation3], 1
    %218 = vsyncpa [#allocation6], 1
    %219 = vsyncpa [#allocation4], 1

// kernel: tpu_custom_call.1
$region0: #{tpu_custom_call.1}
  #allocation0 [shape = 'u32[]', space=smem, size = 0x4, offset = 0x4, fixed_abs, tag = 'smem constant byte address 0x4 - core index']
  #allocation1 [shape = 'u32[72,128]{1,0:T(1,128)}', space=vmem, size = 0x9000, scoped, tag = 'internal scratch']
  %s0 = inlined_call_operand.hbm [shape: f32[8,1024], index: 0, kind: input, shape index: {}]
  %s1 = inlined_call_operand.hbm [shape: bf16[8,1024], index: 1, kind: input, shape index: {}]
  %s2 = inlined_call_operand.vmem [shape: f32[1,8], index: 2, kind: input, shape index: {}]
  %s3 = inlined_call_operand.hbm [shape: f32[8,8], index: 3, kind: output, shape index: {}]
  %s4 = sld [smem:[#allocation0]]
  $region30: #{tpu_custom_call.1} parent=0
    _
  %s6 = ssub.s32 1, %s4
  %s7 = scalar_select 0, %s6, %s4
  $region1: #{tpu_custom_call.1} parent=0
    #allocation2 [shape = 'u8[32768]{0}', space=vmem, size = 0x8000, scoped, tag = 'input window, operand 0, single buffered']
    #allocation3 [shape = 's32[1]{0}', space=sflag, size = 0x4, scoped, tag = 'scoped memory for tpu_custom_call.1']
    #allocation4 [shape = 's32[1]{0}', space=sflag, size = 0x4, scoped, tag = 'scoped memory for tpu_custom_call.1']
    #allocation5 [shape = 'u8[16384]{0}', space=vmem, size = 0x4000, scoped, tag = 'input window, operand 1, single buffered']
    #allocation6 [shape = 's32[1]{0}', space=sflag, size = 0x4, scoped, tag = 'scoped memory for tpu_custom_call.1']
    #allocation7 [shape = 'u8[4096]{0}', space=vmem, size = 0x1000, scoped, tag = 'output window, operand 0, single buffered']
    %8 = vsyncpa [#allocation3], 0
    %9 = vsyncpa [#allocation6], 0
    %10 = vsyncpa [#allocation4], 0
    // Predicated region
    $region2: #{tpu_custom_call.1} parent=1 // pred_check
      _
    $region3: #{tpu_custom_call.1} parent=1 // pred_check_branch
      %12 = sbr.rel (0) target = $region5
    $region4: #{tpu_custom_call.1} parent=1 // pred_region
      %14 = vsyncadd [#allocation3], 0
      %s16 = sshll.u32 %s0, 4
      %s17 = int_to_ptr.hbm [resolvable:$true] %s16
      %s18 = sshll.u32 [#allocation2], 4
      %s19 = int_to_ptr.vmem [resolvable:$true] %s18
      %21 = dma.hbm_to_vmem [thread:$0]  %s17, 1024, %s19, [#allocation3]
    $region5: #{tpu_custom_call.1} parent=1 // pred_fallthru
      _
    // Predicated region
    $region6: #{tpu_custom_call.1} parent=1 // pred_check
      _
    $region7: #{tpu_custom_call.1} parent=1 // pred_check_branch
      %23 = sbr.rel (0) target = $region9
    $region8: #{tpu_custom_call.1} parent=1 // pred_region
      %25 = vsyncadd [#allocation6], 0
      %s27 = sshll.u32 %s1, 4
      %s28 = int_to_ptr.hbm [resolvable:$true] %s27
      %s29 = sshll.u32 [#allocation5], 4
      %s30 = int_to_ptr.vmem [resolvable:$true] %s29
      %32 = dma.hbm_to_vmem [thread:$0]  %s28, 512, %s30, [#allocation6]
    $region9: #{tpu_custom_call.1} parent=1 // pred_fallthru
      _
    // Predicated region
    $region10: #{tpu_custom_call.1} parent=1 // pred_check
      _
    $region11: #{tpu_custom_call.1} parent=1 // pred_check_branch
      %34 = sbr.rel (0) target = $region13
    $region12: #{tpu_custom_call.1} parent=1 // pred_region
      _
    $region13: #{tpu_custom_call.1} parent=1 // pred_fallthru
      _
    // Predicated region
    $region14: #{tpu_custom_call.1} parent=1 // pred_check
      _
    $region15: #{tpu_custom_call.1} parent=1 // pred_check_branch
      %36 = sbr.rel (0) target = $region17
    $region16: #{tpu_custom_call.1} parent=1 // pred_region
      %38 = dma.done [#allocation3], 1024
    $region17: #{tpu_custom_call.1} parent=1 // pred_fallthru
      _
    // Predicated region
    $region18: #{tpu_custom_call.1} parent=1 // pred_check
      _
    $region19: #{tpu_custom_call.1} parent=1 // pred_check_branch
      %40 = sbr.rel (0) target = $region21
    $region20: #{tpu_custom_call.1} parent=1 // pred_region
      %42 = dma.done [#allocation6], 512
    $region21: #{tpu_custom_call.1} parent=1 // pred_fallthru
      _
    %v44 = vld [vmem:[#allocation2] sm:$0xff]
    %v45 = vld [vmem:[#allocation2 + $0x8] sm:$0xff]
    %v46 = vld [vmem:[#allocation2 + $0x10] sm:$0xff]
    %v47 = vld [vmem:[#allocation2 + $0x18] sm:$0xff]
    %v48 = vld [vmem:[#allocation2 + $0x20] sm:$0xff]
    %v49 = vld [vmem:[#allocation2 + $0x28] sm:$0xff]
    %v50 = vld [vmem:[#allocation2 + $0x30] sm:$0xff]
    %v51 = vld [vmem:[#allocation2 + $0x38] sm:$0xff]
    %v52 = vpack.c.bf16 %v44, %v44
    %v53 = vpack.c.bf16 %v45, %v45
    %v54 = vpack.c.bf16 %v46, %v46
    %v55 = vpack.c.bf16 %v47, %v47
    %v56 = vpack.c.bf16 %v48, %v48
    %v57 = vpack.c.bf16 %v49, %v49
    %v58 = vpack.c.bf16 %v50, %v50
    %v59 = vpack.c.bf16 %v51, %v51
    %v60 = vld [vmem:[#allocation5] sm:$0xff]
    %v61 = vld [vmem:[#allocation5 + $0x8] sm:$0xff]
    %v62 = vld [vmem:[#allocation5 + $0x10] sm:$0xff]
    %v63 = vld [vmem:[#allocation5 + $0x18] sm:$0xff]
    %v64 = vld [vmem:[%s2] sm:$0x1]
    %v66 = vperm.slane %v64, 0
    %v72 = vunpack.c.l.b16 %v60
    %v73 = vunpack.c.h.b16 %v60
    %v74 = vunpack.c.l.b16 %v61
    %v75 = vunpack.c.h.b16 %v61
    %v76 = vunpack.c.l.b16 %v62
    %v77 = vunpack.c.h.b16 %v62
    %v78 = vunpack.c.l.b16 %v63
    %v79 = vunpack.c.h.b16 %v63
    %v80 = vpack.c.b16 %v72, %v72
    %v81 = vpack.c.b16 %v73, %v73
    %v82 = vpack.c.b16 %v74, %v74
    %v83 = vpack.c.b16 %v75, %v75
    %v84 = vpack.c.b16 %v76, %v76
    %v85 = vpack.c.b16 %v77, %v77
    %v86 = vpack.c.b16 %v78, %v78
    %v87 = vpack.c.b16 %v79, %v79
    %96 = vmatpush.bf16.xpose.msra.mxu0 0
    %97 = vmatpush.bf16.xpose.msra.mxu0 0
    %98 = vmatpush.bf16.xpose.msra.mxu0 0
    %99 = vmatpush.bf16.xpose.msra.mxu0 0
    %100 = vmatpush.bf16.xpose.msra.mxu0 0
    %101 = vmatpush.bf16.xpose.msra.mxu0 0
    %102 = vmatpush.bf16.xpose.msra.mxu0 0
    %103 = vmatpush.bf16.xpose.msra.mxu0 %v80
    %104 = vmatmul.bf16.gmra.mxu0 %v52
    %v105 = vpop.f32.mrf.mxu0
    %v106 = vadd.f32 %v66, %v105
    %v107 = vpop.f32.mrf.mxu0
    %108 = vdwg.mxu0
    %109 = vmatpush.bf16.xpose.msra.mxu0 0
    %110 = vmatpush.bf16.xpose.msra.mxu0 0
    %111 = vmatpush.bf16.xpose.msra.mxu0 0
    %112 = vmatpush.bf16.xpose.msra.mxu0 0
    %113 = vmatpush.bf16.xpose.msra.mxu0 0
    %114 = vmatpush.bf16.xpose.msra.mxu0 0
    %115 = vmatpush.bf16.xpose.msra.mxu0 0
    %116 = vmatpush.bf16.xpose.msra.mxu0 %v81
    %117 = vmatmul.bf16.gmra.mxu0 %v53
    %v118 = vpop.f32.mrf.mxu0
    %v119 = vadd.f32 %v106, %v118
    %v120 = vpop.f32.mrf.mxu0
    %121 = vdwg.mxu0
    %122 = vmatpush.bf16.xpose.msra.mxu0 0
    %123 = vmatpush.bf16.xpose.msra.mxu0 0
    %124 = vmatpush.bf16.xpose.msra.mxu0 0
    %125 = vmatpush.bf16.xpose.msra.mxu0 0
    %126 = vmatpush.bf16.xpose.msra.mxu0 0
    %127 = vmatpush.bf16.xpose.msra.mxu0 0
    %128 = vmatpush.bf16.xpose.msra.mxu0 0
    %129 = vmatpush.bf16.xpose.msra.mxu0 %v82
    %130 = vmatmul.bf16.gmra.mxu0 %v54
    %v131 = vpop.f32.mrf.mxu0
    %v132 = vadd.f32 %v119, %v131
    %v133 = vpop.f32.mrf.mxu0
    %134 = vdwg.mxu0
    %135 = vmatpush.bf16.xpose.msra.mxu0 0
    %136 = vmatpush.bf16.xpose.msra.mxu0 0
    %137 = vmatpush.bf16.xpose.msra.mxu0 0
    %138 = vmatpush.bf16.xpose.msra.mxu0 0
    %139 = vmatpush.bf16.xpose.msra.mxu0 0
    %140 = vmatpush.bf16.xpose.msra.mxu0 0
    %141 = vmatpush.bf16.xpose.msra.mxu0 0
    %142 = vmatpush.bf16.xpose.msra.mxu0 %v83
    %143 = vmatmul.bf16.gmra.mxu0 %v55
    %v144 = vpop.f32.mrf.mxu0
    %v145 = vadd.f32 %v132, %v144
    %v146 = vpop.f32.mrf.mxu0
    %147 = vdwg.mxu0
    %148 = vmatpush.bf16.xpose.msra.mxu0 0
    %149 = vmatpush.bf16.xpose.msra.mxu0 0
    %150 = vmatpush.bf16.xpose.msra.mxu0 0
    %151 = vmatpush.bf16.xpose.msra.mxu0 0
    %152 = vmatpush.bf16.xpose.msra.mxu0 0
    %153 = vmatpush.bf16.xpose.msra.mxu0 0
    %154 = vmatpush.bf16.xpose.msra.mxu0 0
    %155 = vmatpush.bf16.xpose.msra.mxu0 %v84
    %156 = vmatmul.bf16.gmra.mxu0 %v56
    %v157 = vpop.f32.mrf.mxu0
    %v158 = vadd.f32 %v145, %v157
    %v159 = vpop.f32.mrf.mxu0
    %160 = vdwg.mxu0
    %161 = vmatpush.bf16.xpose.msra.mxu0 0
    %162 = vmatpush.bf16.xpose.msra.mxu0 0
    %163 = vmatpush.bf16.xpose.msra.mxu0 0
    %164 = vmatpush.bf16.xpose.msra.mxu0 0
    %165 = vmatpush.bf16.xpose.msra.mxu0 0
    %166 = vmatpush.bf16.xpose.msra.mxu0 0
    %167 = vmatpush.bf16.xpose.msra.mxu0 0
    %168 = vmatpush.bf16.xpose.msra.mxu0 %v85
    %169 = vmatmul.bf16.gmra.mxu0 %v57
    %v170 = vpop.f32.mrf.mxu0
    %v171 = vadd.f32 %v158, %v170
    %v172 = vpop.f32.mrf.mxu0
    %173 = vdwg.mxu0
    %174 = vmatpush.bf16.xpose.msra.mxu0 0
    %175 = vmatpush.bf16.xpose.msra.mxu0 0
    %176 = vmatpush.bf16.xpose.msra.mxu0 0
    %177 = vmatpush.bf16.xpose.msra.mxu0 0
    %178 = vmatpush.bf16.xpose.msra.mxu0 0
    %179 = vmatpush.bf16.xpose.msra.mxu0 0
    %180 = vmatpush.bf16.xpose.msra.mxu0 0
    %181 = vmatpush.bf16.xpose.msra.mxu0 %v86
    %182 = vmatmul.bf16.gmra.mxu0 %v58
    %v183 = vpop.f32.mrf.mxu0
    %v184 = vadd.f32 %v171, %v183
    %v185 = vpop.f32.mrf.mxu0
    %186 = vdwg.mxu0
    %187 = vmatpush.bf16.xpose.msra.mxu0 0
    %188 = vmatpush.bf16.xpose.msra.mxu0 0
    %189 = vmatpush.bf16.xpose.msra.mxu0 0
    %190 = vmatpush.bf16.xpose.msra.mxu0 0
    %191 = vmatpush.bf16.xpose.msra.mxu0 0
    %192 = vmatpush.bf16.xpose.msra.mxu0 0
    %193 = vmatpush.bf16.xpose.msra.mxu0 0
    %194 = vmatpush.bf16.xpose.msra.mxu0 %v87
    %195 = vmatmul.bf16.gmra.mxu0 %v59
    %v196 = vpop.f32.mrf.mxu0
    %v197 = vadd.f32 %v184, %v196
    %v198 = vpop.f32.mrf.mxu0
    %199 = vdwg.mxu0
    %vm200 = vcmask 64512
    %201 = vst.msk [vmem:[#allocation7] sm:$0xff] %vm200, %v197
    // Predicated region
    $region22: #{tpu_custom_call.1} parent=1 // pred_check
      _
    $region23: #{tpu_custom_call.1} parent=1 // pred_check_branch
      %203 = sbr.rel (0) target = $region25
    $region24: #{tpu_custom_call.1} parent=1 // pred_region
      %205 = vsyncadd [#allocation4], 0
      %s207 = sshll.u32 [#allocation7], 4
      %s208 = int_to_ptr.vmem [resolvable:$true] %s207
      %s209 = sshll.u32 %s3, 4
      %s210 = int_to_ptr.hbm [resolvable:$true] %s209
      %212 = dma.vmem_to_hbm [thread:$0]  %s208, 128, %s210, [#allocation4]
    $region25: #{tpu_custom_call.1} parent=1 // pred_fallthru
      _
    // Predicated region
    $region26: #{tpu_custom_call.1} parent=1 // pred_check
      _
    $region27: #{tpu_custom_call.1} parent=1 // pred_check_branch
      %214 = sbr.rel (0) target = $region29
    $region28: #{tpu_custom_call.1} parent=1 // pred_region
      %216 = dma.done [#allocation4], 128
    $region29: #{tpu_custom_call.1} parent=1 // pred_fallthru
      _
    %217 = vsyncpa [#allocation3], 1
    %218 = vsyncpa [#allocation6], 1
    %219 = vsyncpa [#allocation4], 1

</llo_original>
